<compile_context>
chip_gen: v5e
topology: v5e:2x2
jax: 0.10.0
libtpu: 0.0.40
codegen_flags: <defaults>
</compile_context>

<pallas_src>
import jax
import jax.numpy as jnp
from jax.experimental import pallas as pl
from jax.experimental.pallas import tpu as pltpu

SMEM = pltpu.MemorySpace.SMEM


# ----------------------------------------------------------------------------
# Pallas kernel: identity read of the (1,) parameter via SMEM scalars.
# ----------------------------------------------------------------------------
def weight_id_kernel(w_ref, o_ref):
    # forward() returns the parameter unchanged.  With input/output aliasing
    # this is effectively a no-op write of the same scalar.
    o_ref[0] = w_ref[0]


# ----------------------------------------------------------------------------
# Wrapper: Weight_Id.forward()
# ----------------------------------------------------------------------------
def weight_id_forward(weight):
    """Returns the (1,)-shaped parameter, routed through a Pallas TPU kernel.

    Note: the optimal implementation is simply `return weight`; the pallas_call
    is retained only because a kernel is required here, and is reduced to a
    single SMEM scalar move with the output aliased onto the input buffer.
    """
    return pl.pallas_call(
        weight_id_kernel,
        out_shape=jax.ShapeDtypeStruct(weight.shape, weight.dtype),
        in_specs=[pl.BlockSpec(memory_space=SMEM)],
        out_specs=pl.BlockSpec(memory_space=SMEM),
        input_output_aliases={0: 0},
    )(weight)


# ----------------------------------------------------------------------------
# Parameter init: matches nn.Parameter(torch.Tensor(1)).uniform_(-0.1, 0.0)
# ----------------------------------------------------------------------------
def init_weight_id(key):
    return jax.random.uniform(key, (1,), minval=-0.1, maxval=0.0,
                              dtype=jnp.float32)


# ----------------------------------------------------------------------------
if __name__ == "__main__":
    key = jax.random.PRNGKey(0)
    weight = init_weight_id(key)

    out = jax.jit(weight_id_forward)(weight)
    out = jax.block_until_ready(out)

    # forward() must return the parameter itself, unchanged in shape, dtype
    # and value.
    assert out.shape == weight.shape, out.shape
    assert out.dtype == weight.dtype, out.dtype
    assert bool(jnp.all(jnp.isfinite(out)))
    assert bool(jnp.allclose(out, weight, atol=0.0, rtol=0.0)), (out, weight)
    # value must lie in the init range uniform_(-0.1, 0.0)
    assert bool((out[0] >= -0.1) & (out[0] <= 0.0)), out

    print("KERNEL_OK")
</pallas_src>

<mosaic_0001>
module attributes {stable_mosaic.version = 11 : i64} {
  func.func @weight_id_kernel(%arg0: memref<1xf32, #tpu.memory_space<smem>>, %arg1: memref<1xf32, #tpu.memory_space<smem>>) attributes {dimension_semantics = [], scalar_prefetch = 0 : i64, scratch_operands = 0 : i64, tpu.core_type = #tpu.core_type<tc>} {
    %c0 = arith.constant 0 : index
    %0 = memref.load %arg0[%c0] : memref<1xf32, #tpu.memory_space<smem>>
    %c0_0 = arith.constant 0 : index
    %1 = memref.load %arg1[%c0_0] : memref<1xf32, #tpu.memory_space<smem>>
    memref.store %0, %arg1[%c0_0] : memref<1xf32, #tpu.memory_space<smem>>
    return
  }
}

</mosaic_0001>

<llo_original>
// kernel: weight_id_forward.1
$region0: #{weight_id_forward.1}
  #allocation0 [shape = 'u32[]', space=smem, size = 0x4, offset = 0x4, fixed_abs, tag = 'smem constant byte address 0x4 - core index']
  #allocation1 [shape = 'u32[72,128]{1,0:T(1,128)}', space=vmem, size = 0x9000, scoped, tag = 'internal scratch']
  #allocation2 [shape = 'f32[1]{0:T(128)S(6)}', space=smem, size = 0x200, scoped, tag = 'scoped memory for weight_id_forward.1']
  %s0 = inlined_call_operand.<no memory space> [shape: f32[1], index: 0, kind: input, shape index: {}, may-alias: {0,1}]
  %s1 = inlined_call_operand.hbm [shape: f32[1], index: 1, kind: output, shape index: {}, may-alias: {0,1}]
  %s2 = sld [smem:[#allocation0]]
  $region14: #{weight_id_forward.1} parent=0
    _
  %s4 = ssub.s32 1, %s2
  %s5 = scalar_select 0, %s4, %s2
  %6 = sst [smem:[#allocation2]] %s0
  $region1: #{weight_id_forward.1} parent=0
    #allocation3 [shape = 'u8[512]{0}', space=smem, size = 0x200, scoped, tag = 'output window, operand 0, single buffered']
    #allocation4 [shape = 's32[1]{0}', space=sflag, size = 0x4, scoped, tag = 'scoped memory for weight_id_forward.1']
    %7 = vsyncpa [#allocation4], 0
    // Predicated region
    $region2: #{weight_id_forward.1} parent=1 // pred_check
      _
    $region3: #{weight_id_forward.1} parent=1 // pred_check_branch
      %9 = sbr.rel (0) target = $region5
    $region4: #{weight_id_forward.1} parent=1 // pred_region
      _
    $region5: #{weight_id_forward.1} parent=1 // pred_fallthru
      _
    %s10 = sld [smem:[#allocation2]]
    %s11 = scalar_lea.smem [#allocation3], 0
    %12 = sst [smem:[%s11]] %s10
    // Predicated region
    $region6: #{weight_id_forward.1} parent=1 // pred_check
      _
    $region7: #{weight_id_forward.1} parent=1 // pred_check_branch
      %14 = sbr.rel (0) target = $region9
    $region8: #{weight_id_forward.1} parent=1 // pred_region
      %16 = vsyncadd [#allocation4], 0
      %s18 = sshll.u32 %s1, 4
      %s19 = int_to_ptr.hbm [resolvable:$true] %s18
      %21 = dma.smem_to_hbm [#allocation3], 16, %s19, [#allocation4]
    $region9: #{weight_id_forward.1} parent=1 // pred_fallthru
      _
    // Predicated region
    $region10: #{weight_id_forward.1} parent=1 // pred_check
      _
    $region11: #{weight_id_forward.1} parent=1 // pred_check_branch
      %23 = sbr.rel (0) target = $region13
    $region12: #{weight_id_forward.1} parent=1 // pred_region
      %25 = dma.done [#allocation4], 16
    $region13: #{weight_id_forward.1} parent=1 // pred_fallthru
      _
    %26 = sfence
    %27 = vsyncpa [#allocation4], 1

</llo_original>
